<compile_context>
chip_gen: v7x
topology: tpu7x:2x2x1
jax: 0.10.0
libtpu: 0.0.40
codegen_flags: <defaults>
</compile_context>

<pallas_src>
import functools

import jax
import jax.numpy as jnp
from jax.experimental import pallas as pl
from jax.experimental.pallas import tpu as pltpu


def _vmem_capacity_bytes():
    """Physical VMEM per core; conservative (v7x-sized) fallback on failure."""
    default = 64 * 1024 * 1024
    try:
        info = pltpu.get_tpu_info()
    except Exception:
        return default
    for name in ("vmem_capacity_bytes", "vmem_size_bytes", "vmem_bytes"):
        val = getattr(info, name, None)
        if isinstance(val, int) and val > 0:
            return val
    return default


def _make_kernel(D, td, d_ragged):
    def kernel(x_ref, w_ref, b_ref, o_ref, acc_ref):
        # x_ref: (TB, TD) native dtype   w_ref: (1, TD) f32 target column
        # b_ref: (1, 1) SMEM             o_ref: (TB, 1)   acc_ref: (TB, 1) f32
        k = pl.program_id(1)

        @pl.when(k == 0)
        def _():
            acc_ref[...] = jnp.zeros_like(acc_ref)

        x = x_ref[...].astype(jnp.float32)      # widen in-kernel (VPU, cheap)
        w = w_ref[...]                          # broadcast over sublanes
        prod = x * w
        if d_ragged:
            # Last D chunk is partial: zero out-of-range lanes so stale VMEM
            # garbage never reaches the accumulator.
            lane = jax.lax.broadcasted_iota(jnp.int32, prod.shape, 1)
            prod = jnp.where(k * td + lane < D, prod, 0.0)
        acc_ref[...] += jnp.sum(prod, axis=-1, keepdims=True)   # XLU reduce

        @pl.when(k == pl.num_programs(1) - 1)
        def _():
            o_ref[...] = acc_ref[...] + b_ref[0, 0]

    return kernel


def _choose_tiles(B, D, itemsize, x_budget):
    """Pick (batch tile, D tile) so double-buffered x tiles fit x_budget."""
    # Batch tile.
    if B <= 8:
        tb = B
    else:
        tb = min(1024, (B // 8) * 8)
        if B >= 16:
            # Keep >= 2 grid steps so the "parallel" batch axis can shard
            # across v7x's two TensorCores (no-op on v5e/v6e).
            half = max(8, (pl.cdiv(B, 2) // 8) * 8)
            tb = min(tb, half)

    # Reduction (D) tile under the double-buffered x VMEM budget.
    if 2 * tb * D * itemsize <= x_budget:
        td = D
    else:
        td = (x_budget // (2 * tb * itemsize) // 128) * 128
        if td < 128:
            # Shrink the batch tile instead so a (tb, 128) chunk fits.
            fit_tb = (x_budget // (2 * 128 * itemsize) // 8) * 8
            tb = max(8 if B > 8 else B, min(tb, max(fit_tb, 8)))
            td = 128
        if td > D:
            td = D
    return tb, td


@functools.partial(jax.jit, static_argnames=("target_class",))
def model_wrapper_forward(x_nchw, weight, bias, target_class):
    """Pallas equivalent of ModelWrapper.forward with a linear inner model.

    x_nchw: (B, C, H, W), streamed in its native dtype
    weight: (D, NUM_CLASSES) with D = C*H*W
    bias:   (1, NUM_CLASSES) or (NUM_CLASSES,)
    target_class: static Python int
    returns (B,) float32 == (flatten(x) @ weight + bias)[:, target_class]
    """
    B = x_nchw.shape[0]
    D = weight.shape[0]
    itemsize = jnp.dtype(x_nchw.dtype).itemsize

    # Metadata-only under jit: no HBM copy, no dtype cast of the big tensor.
    x_flat = x_nchw.reshape(B, D)

    # Static class selection: only the target column / bias scalar ever move.
    w_row = weight[:, target_class].astype(jnp.float32).reshape(1, D)
    b_tc = bias.reshape(-1)[target_class].astype(jnp.float32).reshape(1, 1)

    # Generation-aware VMEM budgeting (128 MiB on v5e/v6e, 64 MiB on v7x).
    vmem_phys = _vmem_capacity_bytes()
    x_budget = max(8 * 1024 * 1024, (vmem_phys * 3) // 8)
    vmem_limit = int(min((vmem_phys * 3) // 4, 100 * 1024 * 1024))

    tb, td = _choose_tiles(B, D, itemsize, x_budget)
    nb = pl.cdiv(B, tb)
    nk = pl.cdiv(D, td)
    d_ragged = (D % td) != 0

    kernel = _make_kernel(D, td, d_ragged)

    out = pl.pallas_call(
        kernel,
        out_shape=jax.ShapeDtypeStruct((B, 1), jnp.float32),
        grid=(nb, nk),                                   # reduction axis last
        in_specs=[
            pl.BlockSpec((tb, td), lambda i, k: (i, k)),           # x tile
            pl.BlockSpec((1, td), lambda i, k: (0, k)),            # w chunk
            pl.BlockSpec(memory_space=pltpu.MemorySpace.SMEM),     # bias scalar
        ],
        out_specs=pl.BlockSpec((tb, 1), lambda i, k: (i, 0)),
        scratch_shapes=[pltpu.VMEM((tb, 1), jnp.float32)],
        compiler_params=pltpu.CompilerParams(
            dimension_semantics=("parallel", "arbitrary"),
            vmem_limit_bytes=vmem_limit,
        ),
        cost_estimate=pl.CostEstimate(
            flops=2 * B * D,
            transcendentals=0,
            bytes_accessed=B * D * itemsize + D * 4 + B * 4,
        ),
    )(x_flat, w_row, b_tc)

    return out[:, 0]  # (B,)


if __name__ == "__main__":
    # Small shapes consistent with the forward: an image-classifier input.
    B, C, H, W = 2, 4, 16, 16
    NUM_CLASSES = 16
    TARGET_CLASS = 3
    D = C * H * W

    key = jax.random.PRNGKey(0)
    kx, kw, kb = jax.random.split(key, 3)

    x = jax.random.normal(kx, (B, C, H, W), dtype=jnp.float32)
    # Deterministic synthetic parameters for the inner linear model.
    weight = jax.random.normal(kw, (D, NUM_CLASSES), dtype=jnp.float32) * 0.02
    bias = jax.random.normal(kb, (1, NUM_CLASSES), dtype=jnp.float32) * 0.1

    out = model_wrapper_forward(x, weight, bias, target_class=TARGET_CLASS)
    out = jax.block_until_ready(out)

    # Reference check in plain JAX (full inner model, then class selection).
    logits = jnp.dot(x.reshape(B, D), weight,
                     precision=jax.lax.Precision.HIGHEST) + bias
    ref = logits[:, TARGET_CLASS]
    assert out.shape == (B,)
    assert jnp.allclose(out, ref, atol=1e-4, rtol=1e-4)

    print("KERNEL_OK")
</pallas_src>

<mosaic_0001>
module attributes {stable_mosaic.version = 11 : i64} {
  func.func @kernel(%arg0: i32, %arg1: i32, %arg2: memref<2x1024xf32, #tpu.memory_space<vmem>>, %arg3: memref<1x1024xf32, #tpu.memory_space<vmem>>, %arg4: memref<1x1xf32, #tpu.memory_space<smem>>, %arg5: memref<2x1xf32, #tpu.memory_space<vmem>>, %arg6: memref<2x1xf32, #tpu.memory_space<vmem>>) attributes {dimension_semantics = [#tpu.dimension_semantics<parallel>, #tpu.dimension_semantics<arbitrary>], iteration_bounds = array<i64: 1, 1>, scalar_prefetch = 0 : i64, scratch_operands = 1 : i64, tpu.core_type = #tpu.core_type<tc>, window_params = [{transform_indices = @transform_0, window_bounds = array<i64: 2, 1024>}, {transform_indices = @transform_1, window_bounds = array<i64: 1, 1024>}, {transform_indices = @transform_2, window_bounds = array<i64: 1, 1>}, {transform_indices = @transform_3, window_bounds = array<i64: 2, 1>}]} {
    %c0_i32 = arith.constant 0 : i32
    %0 = arith.cmpi eq, %arg1, %c0_i32 : i32
    %1 = arith.extui %0 : i1 to i32
    %c0_i32_0 = arith.constant 0 : i32
    %2 = arith.cmpi ne, %1, %c0_i32_0 : i32
    scf.if %2 {
      %cst_10 = arith.constant 0.000000e+00 : f32
      %15 = vector.broadcast %cst_10 : f32 to vector<2x1xf32>
      %c0_11 = arith.constant 0 : index
      %c0_12 = arith.constant 0 : index
      %16 = vector.load %arg6[%c0_11, %c0_12] : memref<2x1xf32, #tpu.memory_space<vmem>>, vector<2x1xf32>
      tpu.vector_store %arg6[%c0_11, %c0_12], %15 {strides = array<i32>} : memref<2x1xf32, #tpu.memory_space<vmem>>, vector<2x1xf32>,
    } else {
    }
    %c0 = arith.constant 0 : index
    %c0_1 = arith.constant 0 : index
    %3 = vector.load %arg2[%c0, %c0_1] : memref<2x1024xf32, #tpu.memory_space<vmem>>, vector<2x1024xf32>
    %c0_2 = arith.constant 0 : index
    %c0_3 = arith.constant 0 : index
    %4 = vector.load %arg3[%c0_2, %c0_3] : memref<1x1024xf32, #tpu.memory_space<vmem>>, vector<1x1024xf32>
    %5 = vector.broadcast %4 : vector<1x1024xf32> to vector<2x1024xf32>
    %6 = arith.mulf %3, %5 : vector<2x1024xf32>
    %c0_4 = arith.constant 0 : index
    %c0_5 = arith.constant 0 : index
    %7 = vector.load %arg6[%c0_4, %c0_5] : memref<2x1xf32, #tpu.memory_space<vmem>>, vector<2x1xf32>
    %cst = arith.constant dense<0.000000e+00> : vector<2xf32>
    %8 = vector.multi_reduction <add>, %6, %cst [1] : vector<2x1024xf32> to vector<2xf32>
    %9 = vector.shape_cast %8 : vector<2xf32> to vector<2x1xf32>
    %10 = arith.addf %7, %9 : vector<2x1xf32>
    %c0_6 = arith.constant 0 : index
    %c0_7 = arith.constant 0 : index
    %11 = vector.load %arg6[%c0_6, %c0_7] : memref<2x1xf32, #tpu.memory_space<vmem>>, vector<2x1xf32>
    tpu.vector_store %arg6[%c0_6, %c0_7], %10 {strides = array<i32>} : memref<2x1xf32, #tpu.memory_space<vmem>>, vector<2x1xf32>,
    %c0_i32_8 = arith.constant 0 : i32
    %12 = arith.cmpi eq, %arg1, %c0_i32_8 : i32
    %13 = arith.extui %12 : i1 to i32
    %c0_i32_9 = arith.constant 0 : i32
    %14 = arith.cmpi ne, %13, %c0_i32_9 : i32
    scf.if %14 {
      %c0_10 = arith.constant 0 : index
      %c0_11 = arith.constant 0 : index
      %15 = vector.load %arg6[%c0_10, %c0_11] : memref<2x1xf32, #tpu.memory_space<vmem>>, vector<2x1xf32>
      %c0_12 = arith.constant 0 : index
      %c0_13 = arith.constant 0 : index
      %16 = memref.load %arg4[%c0_12, %c0_13] : memref<1x1xf32, #tpu.memory_space<smem>>
      %17 = vector.broadcast %16 : f32 to vector<2x1xf32>
      %18 = arith.addf %15, %17 : vector<2x1xf32>
      %c0_14 = arith.constant 0 : index
      %c0_15 = arith.constant 0 : index
      %19 = vector.load %arg5[%c0_14, %c0_15] : memref<2x1xf32, #tpu.memory_space<vmem>>, vector<2x1xf32>
      tpu.vector_store %arg5[%c0_14, %c0_15], %18 {strides = array<i32>} : memref<2x1xf32, #tpu.memory_space<vmem>>, vector<2x1xf32>,
    } else {
    }
    return
  }
  func.func @transform_0(%arg0: i32, %arg1: i32) -> (i32, i32) {
    %c0_i32 = arith.constant 0 : i32
    return %arg0, %arg1 : i32, i32
  }
  func.func @transform_1(%arg0: i32, %arg1: i32) -> (i32, i32) {
    %c0_i32 = arith.constant 0 : i32
    %c0_i32_0 = arith.constant 0 : i32
    return %c0_i32, %arg1 : i32, i32
  }
  func.func @transform_2(%arg0: i32, %arg1: i32) -> (i32, i32) {
    %c0_i32 = arith.constant 0 : i32
    %c0_i32_0 = arith.constant 0 : i32
    %c0_i32_1 = arith.constant 0 : i32
    return %c0_i32, %c0_i32_0 : i32, i32
  }
  func.func @transform_3(%arg0: i32, %arg1: i32) -> (i32, i32) {
    %c0_i32 = arith.constant 0 : i32
    %c0_i32_0 = arith.constant 0 : i32
    return %arg0, %c0_i32 : i32, i32
  }
}

</mosaic_0001>

<llo_original>
// kernel: model_wrapper_forward.1
$region0: #{model_wrapper_forward.1}
  #allocation0 [shape = 'u32[]', space=smem, size = 0x4, offset = 0x4, fixed_abs, tag = 'smem constant byte address 0x4 - core index']
  #allocation1 [shape = 'u32[144,128]{1,0:T(1,128)}', space=vmem, size = 0x12000, scoped, tag = 'internal scratch']
  #allocation2 [shape = 'f32[2,1]{1,0:T(2,128)}', space=vmem, size = 0x400, scoped, tag = 'scratch operand']
  #allocation3 [shape = 'f32[1,1]{1,0:T(1,128)S(6)}', space=smem, size = 0x200, scoped, tag = 'scoped memory for model_wrapper_forward.1']
  %s0 = inlined_call_operand.vmem [shape: f32[2,1024], index: 0, kind: input, shape index: {}]
  %s1 = inlined_call_operand.vmem [shape: f32[1,1024], index: 1, kind: input, shape index: {}]
  %s2 = inlined_call_operand.<no memory space> [shape: f32[1,1], index: 2, kind: input, shape index: {}]
  %s3 = inlined_call_operand.vmem [shape: f32[2,1], index: 3, kind: output, shape index: {}]
  %s4 = sld [smem:[#allocation0]]
  $region30: #{model_wrapper_forward.1} parent=0
    _
  %s6 = ssub.s32 1, %s4
  %s7 = scalar_select 0, %s6, %s4
  %8 = sst [smem:[#allocation3]] %s2
  // Predicated region
  $region2: #{model_wrapper_forward.1} parent=0 // pred_check
    _
  $region3: #{model_wrapper_forward.1} parent=0 // pred_check_branch
    %10 = sbr.rel (0) target = $region5
  $region4: #{model_wrapper_forward.1} parent=0 // pred_region
    _
  $region5: #{model_wrapper_forward.1} parent=0 // pred_fallthru
    _
  // Predicated region
  $region6: #{model_wrapper_forward.1} parent=0 // pred_check
    _
  $region7: #{model_wrapper_forward.1} parent=0 // pred_check_branch
    %12 = sbr.rel (0) target = $region9
  $region8: #{model_wrapper_forward.1} parent=0 // pred_region
    _
  $region9: #{model_wrapper_forward.1} parent=0 // pred_fallthru
    _
  // Predicated region
  $region10: #{model_wrapper_forward.1} parent=0 // pred_check
    _
  $region11: #{model_wrapper_forward.1} parent=0 // pred_check_branch
    %14 = sbr.rel (0) target = $region13
  $region12: #{model_wrapper_forward.1} parent=0 // pred_region
    _
  $region13: #{model_wrapper_forward.1} parent=0 // pred_fallthru
    _
  %p15 = scmp.eq.s32.totalorder 0, 0
  // Predicated region
  $region14: #{model_wrapper_forward.1} parent=0 // pred_check
    %p16 = pneg %p15
  $region15: #{model_wrapper_forward.1} parent=0 // pred_check_branch
    %18 = sbr.rel (%p16) target = $region17
  $region16: #{model_wrapper_forward.1} parent=0 // pred_region
    %vm19 = vcmask 1024
    %20 = vst.msk [vmem:[#allocation2] sm:$0x3] %vm19, 0.0
  $region17: #{model_wrapper_forward.1} parent=0 // pred_fallthru
    _
  %v21 = vld [vmem:[%s0] sm:$0xff]
  %v22 = vld [vmem:[%s0 + $0x8] sm:$0xff]
  %v23 = vld [vmem:[%s1] sm:$0xff]
  %v25 = vlaneseq
  %v26 = vshrl.u32 %v25, 7
  %v27 = vsub.s32 0, %v26
  %v28 = vrot.slane %v23, %v27
  %v29 = vlaneseq
  %v30 = vshrl.u32 %v29, 7
  %v31 = vsub.s32 1, %v30
  %v32 = vrot.slane %v23, %v31
  %v33 = vlaneseq
  %v34 = vshrl.u32 %v33, 7
  %v35 = vsub.s32 2, %v34
  %v36 = vrot.slane %v23, %v35
  %v37 = vlaneseq
  %v38 = vshrl.u32 %v37, 7
  %v39 = vsub.s32 3, %v38
  %v40 = vrot.slane %v23, %v39
  %v41 = vlaneseq
  %v42 = vshrl.u32 %v41, 7
  %v43 = vsub.s32 4, %v42
  %v44 = vrot.slane %v23, %v43
  %v45 = vlaneseq
  %v46 = vshrl.u32 %v45, 7
  %v47 = vsub.s32 5, %v46
  %v48 = vrot.slane %v23, %v47
  %v49 = vlaneseq
  %v50 = vshrl.u32 %v49, 7
  %v51 = vsub.s32 6, %v50
  %v52 = vrot.slane %v23, %v51
  %v53 = vlaneseq
  %v54 = vshrl.u32 %v53, 7
  %v55 = vsub.s32 7, %v54
  %v56 = vrot.slane %v23, %v55
  %v57 = vcombine.low %v28, %v32
  %v58 = vcombine.low %v36, %v40
  %v60 = vunpack.c.l.s4 1983009808
  %v61 = vunpack.c.0.s8 %v60
  %v62 = vlaneseq
  %v63 = vshrl.u32 %v62, 7
  %v64 = vsub.s32 %v61, %v63
  %v65 = vrot.slane %v57, %v64
  %v67 = vunpack.c.l.s4 1983009808
  %v68 = vunpack.c.0.s8 %v67
  %v69 = vlaneseq
  %v70 = vshrl.u32 %v69, 7
  %v71 = vsub.s32 %v68, %v70
  %v72 = vrot.slane %v58, %v71
  %v73 = vcombine.low %v65, %v72
  %v74 = vcombine.low %v44, %v48
  %v75 = vcombine.low %v52, %v56
  %v77 = vunpack.c.l.s4 1983009808
  %v78 = vunpack.c.0.s8 %v77
  %v79 = vlaneseq
  %v80 = vshrl.u32 %v79, 7
  %v81 = vsub.s32 %v78, %v80
  %v82 = vrot.slane %v74, %v81
  %v84 = vunpack.c.l.s4 1983009808
  %v85 = vunpack.c.0.s8 %v84
  %v86 = vlaneseq
  %v87 = vshrl.u32 %v86, 7
  %v88 = vsub.s32 %v85, %v87
  %v89 = vrot.slane %v75, %v88
  %v90 = vcombine.low %v82, %v89
  %v93 = vmul.f32 %v21, %v73
  %v94 = vmul.f32 %v22, %v90
  %v95 = vld [vmem:[#allocation2] sm:$0x3]
  %v98 = vcombine.high %v93, %v93
  %v100 = vunpack.c.l.s4 1983009808
  %v101 = vunpack.c.0.s8 %v100
  %v102 = vlaneseq
  %v103 = vshrl.u32 %v102, 7
  %v104 = vsub.s32 %v101, %v103
  %v105 = vrot.slane %v93, %v104
  %v107 = vunpack.c.l.s4 1983009808
  %v108 = vunpack.c.0.s8 %v107
  %v109 = vlaneseq
  %v110 = vshrl.u32 %v109, 7
  %v111 = vsub.s32 %v108, %v110
  %v112 = vrot.slane %v98, %v111
  %v113 = vcombine.high %v105, %v105
  %v114 = vcombine.high %v112, %v112
  %v115 = vcombine.high %v94, %v94
  %v117 = vunpack.c.l.s4 1983009808
  %v118 = vunpack.c.0.s8 %v117
  %v119 = vlaneseq
  %v120 = vshrl.u32 %v119, 7
  %v121 = vsub.s32 %v118, %v120
  %v122 = vrot.slane %v94, %v121
  %v124 = vunpack.c.l.s4 1983009808
  %v125 = vunpack.c.0.s8 %v124
  %v126 = vlaneseq
  %v127 = vshrl.u32 %v126, 7
  %v128 = vsub.s32 %v125, %v127
  %v129 = vrot.slane %v115, %v128
  %v130 = vcombine.high %v122, %v122
  %v131 = vcombine.high %v129, %v129
  %vm140 = vcmask 1041408
  %v141 = vsel %vm140, %v105, 0.0
  %v142 = vsel %vm140, %v113, 0.0
  %v143 = vadd.f32 %v141, %v142
  %v144 = vsel %vm140, %v112, 0.0
  %v145 = vadd.f32 %v143, %v144
  %v146 = vsel %vm140, %v114, 0.0
  %v147 = vadd.f32 %v145, %v146
  %v148 = vsel %vm140, %v122, 0.0
  %v149 = vadd.f32 %v147, %v148
  %v150 = vsel %vm140, %v130, 0.0
  %v151 = vadd.f32 %v149, %v150
  %v152 = vsel %vm140, %v129, 0.0
  %v153 = vadd.f32 %v151, %v152
  %v154 = vsel %vm140, %v131, 0.0
  %v155 = vadd.f32 %v153, %v154
  %156 = vadd.xlane.f32.xlu0 %v155
  %v157 = vpop.xlane.xlu0 %156
  %v158 = vadd.f32 %v95, %v157
  %vm159 = vcmask 1024
  %160 = vst.msk [vmem:[#allocation2] sm:$0x3] %vm159, %v158
  // Predicated region
  $region18: #{model_wrapper_forward.1} parent=0 // pred_check
    %p161 = pneg %p15
  $region19: #{model_wrapper_forward.1} parent=0 // pred_check_branch
    %163 = sbr.rel (%p161) target = $region21
  $region20: #{model_wrapper_forward.1} parent=0 // pred_region
    %v164 = vld [vmem:[#allocation2] sm:$0x3]
    %s165 = sld [smem:[#allocation3]]
    %v166 = vstv %s165
    %v167 = vadd.f32 %v164, %v166
    %168 = vst.msk [vmem:[%s3] sm:$0x3] %vm159, %v167
  $region21: #{model_wrapper_forward.1} parent=0 // pred_fallthru
    _
  // Predicated region
  $region22: #{model_wrapper_forward.1} parent=0 // pred_check
    _
  $region23: #{model_wrapper_forward.1} parent=0 // pred_check_branch
    %170 = sbr.rel (0) target = $region25
  $region24: #{model_wrapper_forward.1} parent=0 // pred_region
    _
  $region25: #{model_wrapper_forward.1} parent=0 // pred_fallthru
    _
  // Predicated region
  $region26: #{model_wrapper_forward.1} parent=0 // pred_check
    _
  $region27: #{model_wrapper_forward.1} parent=0 // pred_check_branch
    %172 = sbr.rel (0) target = $region29
  $region28: #{model_wrapper_forward.1} parent=0 // pred_region
    _
  $region29: #{model_wrapper_forward.1} parent=0 // pred_fallthru
    _

</llo_original>
